<compile_context>
chip_gen: v6e
topology: v6e:2x2x1
jax: 0.10.0
libtpu: 0.0.40
codegen_flags: <defaults>
</compile_context>

<pallas_src>
import jax
import jax.numpy as jnp
import numpy as np
from jax import lax
from jax.experimental import pallas as pl
from jax.experimental.pallas import tpu as pltpu

SHAPES = ((4, 16), (32,))                       # per-state shapes (self.shapes)
SIZES = tuple(int(np.prod(s)) for s in SHAPES)  # (64, 32)
TOTAL = sum(SIZES)                              # flat state length = 96
BATCH_TILE = 8                                  # sublane-aligned batch tile


def _tuple_func_kernel(scalars_ref, y_ref, w_ref, out_ref):
    """base_func(t, (y1, y2)) on a (BATCH_TILE, 96) tile, fully fused in VMEM.

    scalars_ref : SMEM (2,)  f32 = [t, sin(t)]   (scalar-prefetched, read once)
    y_ref       : VMEM (TB, 96) f32 flat states  (y1_flat | y2 concatenated)
    w_ref       : VMEM (96, 96) bf16 block-diag  diag(W1, W1, W1, W1, W2)
    out_ref     : VMEM (TB, 96) f32 flat derivative (f1_flat | f2)
    """
    t = scalars_ref[0]
    sin_t = scalars_ref[1]

    y = y_ref[...]                                              # (TB, 96) f32

    # Single MXU issue covering both per-state matmuls (block-diagonal weight).
    # bf16 operands, f32 accumulation — MXU-native on v5e/v6e/v7x.
    lin = jnp.dot(y.astype(jnp.bfloat16), w_ref[...],
                  preferred_element_type=jnp.float32)           # (TB, 96) f32

    # Elementwise epilogue stays in f32 (v5e VPU/EUP have no bf16 path).
    lane = lax.broadcasted_iota(jnp.int32, y.shape, dimension=1)
    f1 = jnp.tanh(lin + t)          # state 1: tanh(y1 @ W1 + t)   (lanes < 64)
    f2 = sin_t * y + lin            # state 2: sin(t)*y2 + y2 @ W2 (lanes >= 64)
    out_ref[...] = jnp.where(lane < SIZES[0], f1, f2)


def _build_block_diag_weight(w1, w2):
    """Pack diag(W1, W1, W1, W1, W2) into one (96, 96) bf16 weight (glue, once)."""
    reps, n1 = SHAPES[0]            # 4 rows of 16 in the flat y1 chunk
    wb = jnp.zeros((TOTAL, TOTAL), dtype=jnp.float32)
    for r in range(reps):
        wb = wb.at[r * n1:(r + 1) * n1, r * n1:(r + 1) * n1].set(w1)
    wb = wb.at[reps * n1:, reps * n1:].set(w2)
    return wb.astype(jnp.bfloat16)


def tuple_func_forward_batched(t, y_batch, w_big):
    """Batched _TupleFunc.forward: (B, 96) flat states -> (B, 96) flat derivatives."""
    b = y_batch.shape[0]
    n_blocks = pl.cdiv(b, BATCH_TILE)
    bp = n_blocks * BATCH_TILE
    if bp != b:                     # pad batch to a tile multiple (no-op when aligned)
        y_batch = jnp.pad(y_batch, ((0, bp - b), (0, 0)))

    t = jnp.asarray(t, dtype=jnp.float32)
    scalars = jnp.stack([t, jnp.sin(t)])        # sin(t) hoisted: computed once

    out = pl.pallas_call(
        _tuple_func_kernel,
        out_shape=jax.ShapeDtypeStruct((bp, TOTAL), jnp.float32),
        grid_spec=pltpu.PrefetchScalarGridSpec(
            num_scalar_prefetch=1,              # [t, sin(t)] -> SMEM before the grid
            grid=(n_blocks,),
            in_specs=[
                pl.BlockSpec((BATCH_TILE, TOTAL), lambda i, s: (i, 0)),  # y tile
                pl.BlockSpec((TOTAL, TOTAL), lambda i, s: (0, 0)),       # W resident
            ],
            out_specs=pl.BlockSpec((BATCH_TILE, TOTAL), lambda i, s: (i, 0)),
        ),
        compiler_params=pltpu.CompilerParams(
            dimension_semantics=("parallel",),  # batch axis: megacore / 2 TCs on v7x
            vmem_limit_bytes=32 * 1024 * 1024,  # explicit; safe on v7x's 64 MiB VMEM
        ),
    )(scalars, y_batch, w_big)

    return out[:b] if bp != b else out


def tuple_func_forward(t, y, w1, w2):
    """Single-state _TupleFunc.forward(t, y) -> flat derivative of length 96."""
    # TODO(synk): base_func is user-supplied in the original module; the synthetic
    # vector field above stands in for it.
    w_big = _build_block_diag_weight(w1, w2)
    return tuple_func_forward_batched(t, y[None, :], w_big)[0]


if __name__ == "__main__":
    key = jax.random.PRNGKey(0)
    k_y, k_w1, k_w2 = jax.random.split(key, 3)

    B = 16
    y_batch = jax.random.normal(k_y, (B, TOTAL), dtype=jnp.float32)
    w1 = 0.1 * jax.random.normal(k_w1, (SHAPES[0][1], SHAPES[0][1]), dtype=jnp.float32)
    w2 = 0.1 * jax.random.normal(k_w2, (SHAPES[1][0], SHAPES[1][0]), dtype=jnp.float32)
    t = jnp.float32(0.5)

    w_big = _build_block_diag_weight(w1, w2)      # built once, reused across calls

    out_batched = jax.block_until_ready(
        jax.jit(tuple_func_forward_batched)(t, y_batch, w_big))
    out_single = jax.block_until_ready(
        jax.jit(tuple_func_forward)(t, y_batch[0], w1, w2))

    # pure-JAX f32 reference of the same forward pass
    y1 = y_batch[:, :SIZES[0]].reshape(B, *SHAPES[0])           # (B, 4, 16)
    y2 = y_batch[:, SIZES[0]:].reshape(B, SHAPES[1][0])         # (B, 32)
    r1 = jnp.tanh(jnp.einsum("bij,jk->bik", y1, w1) + t)
    r2 = jnp.sin(t) * y2 + y2 @ w2
    ref = jnp.concatenate([r1.reshape(B, -1), r2], axis=-1)

    assert out_batched.shape == (B, TOTAL) and out_batched.dtype == jnp.float32
    assert out_single.shape == (TOTAL,) and out_single.dtype == jnp.float32
    # bf16 MXU operands vs. f32 reference -> moderately relaxed tolerance
    np.testing.assert_allclose(np.asarray(out_batched), np.asarray(ref),
                               rtol=2e-2, atol=2e-2)
    np.testing.assert_allclose(np.asarray(out_single), np.asarray(ref[0]),
                               rtol=2e-2, atol=2e-2)
    print("KERNEL_OK")
</pallas_src>

<mosaic_0001>
module attributes {stable_mosaic.version = 11 : i64} {
  func.func @_tuple_func_kernel(%arg0: i32, %arg1: memref<2xf32, #tpu.memory_space<smem>>, %arg2: memref<8x96xf32, #tpu.memory_space<vmem>>, %arg3: memref<96x96xbf16, #tpu.memory_space<vmem>>, %arg4: memref<8x96xf32, #tpu.memory_space<vmem>>) attributes {dimension_semantics = [#tpu.dimension_semantics<parallel>], iteration_bounds = array<i64: 2>, scalar_prefetch = 1 : i64, scratch_operands = 0 : i64, tpu.core_type = #tpu.core_type<tc>, window_params = [{transform_indices = @transform_0, window_bounds = array<i64: 8, 96>}, {pipeline_mode = #tpu.pipeline_mode<synchronous>, transform_indices = @transform_1, window_bounds = array<i64: 96, 96>}, {transform_indices = @transform_2, window_bounds = array<i64: 8, 96>}]} {
    %c0 = arith.constant 0 : index
    %0 = memref.load %arg1[%c0] : memref<2xf32, #tpu.memory_space<smem>>
    %c1 = arith.constant 1 : index
    %1 = memref.load %arg1[%c1] : memref<2xf32, #tpu.memory_space<smem>>
    %c0_0 = arith.constant 0 : index
    %c0_1 = arith.constant 0 : index
    %2 = vector.load %arg2[%c0_0, %c0_1] : memref<8x96xf32, #tpu.memory_space<vmem>>, vector<8x96xf32>
    %3 = arith.truncf %2 : vector<8x96xf32> to vector<8x96xbf16>
    %c0_2 = arith.constant 0 : index
    %c0_3 = arith.constant 0 : index
    %4 = vector.load %arg3[%c0_2, %c0_3] : memref<96x96xbf16, #tpu.memory_space<vmem>>, vector<96x96xbf16>
    %cst = arith.constant dense<0.000000e+00> : vector<8x96xf32>
    %5 = tpu.matmul %3, %4, %cst {dimension_numbers = #tpu.dot_dimension_numbers<[1], [0], [0], [1], [0, 0, 1, 1], [], []>} : vector<8x96xbf16>, vector<96x96xbf16>, vector<8x96xf32> -> vector<8x96xf32>
    %6 = tpu.iota {dimensions = array<i32: 1>} : vector<8x96xi32>
    %7 = vector.broadcast %0 : f32 to vector<8x96xf32>
    %8 = arith.addf %5, %7 : vector<8x96xf32>
    %9 = math.tanh %8 : vector<8x96xf32>
    %10 = vector.broadcast %1 : f32 to vector<8x96xf32>
    %11 = arith.mulf %10, %2 : vector<8x96xf32>
    %12 = arith.addf %11, %5 : vector<8x96xf32>
    %c64_i32 = arith.constant 64 : i32
    %13 = vector.broadcast %c64_i32 : i32 to vector<8x96xi32>
    %14 = arith.cmpi slt, %6, %13 : vector<8x96xi32>
    %15 = arith.select %14, %9, %12 : vector<8x96xi1>, vector<8x96xf32>
    %c0_4 = arith.constant 0 : index
    %c0_5 = arith.constant 0 : index
    %16 = vector.load %arg4[%c0_4, %c0_5] : memref<8x96xf32, #tpu.memory_space<vmem>>, vector<8x96xf32>
    tpu.vector_store %arg4[%c0_4, %c0_5], %15 {strides = array<i32>} : memref<8x96xf32, #tpu.memory_space<vmem>>, vector<8x96xf32>,
    return
  }
  func.func @transform_0(%arg0: i32, %arg1: memref<2xf32, #tpu.memory_space<smem>>) -> (i32, i32) {
    %c0_i32 = arith.constant 0 : i32
    %c0_i32_0 = arith.constant 0 : i32
    return %arg0, %c0_i32 : i32, i32
  }
  func.func @transform_1(%arg0: i32, %arg1: memref<2xf32, #tpu.memory_space<smem>>) -> (i32, i32) {
    %c0_i32 = arith.constant 0 : i32
    %c0_i32_0 = arith.constant 0 : i32
    %c0_i32_1 = arith.constant 0 : i32
    return %c0_i32, %c0_i32_0 : i32, i32
  }
  func.func @transform_2(%arg0: i32, %arg1: memref<2xf32, #tpu.memory_space<smem>>) -> (i32, i32) {
    %c0_i32 = arith.constant 0 : i32
    %c0_i32_0 = arith.constant 0 : i32
    return %arg0, %c0_i32 : i32, i32
  }
}

</mosaic_0001>

<llo_original>
// kernel: tuple_func_forward_batched.1
$region0: #{tuple_func_forward_batched.1}
  #allocation0 [shape = 'u32[]', space=smem, size = 0x4, offset = 0x4, fixed_abs, tag = 'smem constant byte address 0x4 - core index']
  #allocation1 [shape = 'u32[144,128]{1,0:T(1,128)}', space=vmem, size = 0x12000, scoped, tag = 'internal scratch']
  #allocation2 [shape = 's32[1]{0}', space=sflag, size = 0x4, scoped, tag = 'scoped memory for tuple_func_forward_batched.1']
  #allocation3 [shape = 'u8[512]{0}', space=smem, size = 0x200, scoped, tag = 'prefetched SMEM operand 0']
  %s0 = inlined_call_operand.vmem [shape: f32[2], index: 0, kind: input, shape index: {}]
  %s1 = inlined_call_operand.hbm [shape: f32[16,96], index: 1, kind: input, shape index: {}]
  %s2 = inlined_call_operand.hbm [shape: bf16[96,96], index: 2, kind: input, shape index: {}]
  %s3 = inlined_call_operand.hbm [shape: f32[16,96], index: 3, kind: output, shape index: {}]
  %s4 = sld [smem:[#allocation0]]
  $region49: #{tuple_func_forward_batched.1} parent=0
    _
  %s6 = ssub.s32 1, %s4
  %s7 = scalar_select 0, %s6, %s4
  %s8 = sshll.u32 %s0, 4
  %s9 = int_to_ptr.vmem [resolvable:$true] %s8
  %11 = dma.vmem_to_smem %s9, 16, [#allocation3], [#allocation2]
  %12 = dma.done [#allocation2], 16
  %13 = sfence
  $region1: #{tuple_func_forward_batched.1} parent=0
    #allocation4 [shape = 'u8[8192]{0}', space=vmem, size = 0x2000, scoped, tag = 'input window, operand 1']
    #allocation5 [shape = 's32[2]{0}', space=sflag, size = 0x8, scoped, tag = 'scoped memory for tuple_func_forward_batched.1']
    #allocation6 [shape = 's32[2]{0}', space=sflag, size = 0x8, scoped, tag = 'scoped memory for tuple_func_forward_batched.1']
    #allocation7 [shape = 'u8[24576]{0}', space=vmem, size = 0x6000, scoped, tag = 'input window, operand 2, single buffered']
    #allocation8 [shape = 's32[1]{0}', space=sflag, size = 0x4, scoped, tag = 'scoped memory for tuple_func_forward_batched.1']
    #allocation9 [shape = 'u8[8192]{0}', space=vmem, size = 0x2000, scoped, tag = 'output window, operand 0']
    %14 = vsyncpa [#allocation5], 0
    %s15 = scalar_lea.sflag [#allocation5], 1
    %16 = vsyncpa %s15, 0
    %17 = vsyncpa [#allocation8], 0
    %18 = vsyncpa [#allocation6], 0
    %s19 = scalar_lea.sflag [#allocation6], 1
    %20 = vsyncpa %s19, 0
    loop: start=0, step=1, limit=4
    $region2: #{tuple_func_forward_batched.1} parent=1 // loop_pre_header
      _
    $region3: #{tuple_func_forward_batched.1} parent=1 // loop_header
      %s22 = sphi 0, %s26
      %p23 = scmp.ge.s32.totalorder %s22, 4
      %s32 = sphi 0, %s34
      %s35 = sphi 0, %s32
      %s36 = sphi 0, %s35
      %s52 = sphi 0, %s36
      %s56 = sphi 0, %s56
      %s58 = sphi 0, %s56
      %s59 = sphi 0, %s58
      %s73 = sphi 0, %s59
      %s79 = sphi 0, %s81
      %s82 = sphi 0, %s79
      %s83 = sphi 0, %s82
      %s99 = sphi 0, %s83
    $region4: #{tuple_func_forward_batched.1} parent=1 // loop_header_branch
      %25 = sbr.rel (%p23) target = $region8
    $region5: #{tuple_func_forward_batched.1} parent=1 // loop_body
      %s27 = ssub.s32 %s22, 1
      %s28 = ssub.s32 %s22, 2
      %s29 = sadd.s32 %s22, 1
      %s30 = ssub.s32 %s22, %s29
      %p31 = scmp.eq.s32.totalorder %s30, 0
      %s33 = sadd.s32 %s32, 1
      %s34 = scalar_select %p31, %s32, %s33
      %p37 = pneg %p31
      %p38 = scmp.eq.s32.totalorder %s22, 1
      %p39 = por %p37, %p38
      %p40 = scmp.ne.s32.totalorder %s32, %s35
      %p41 = scmp.eq.s32.totalorder %s22, 0
      %p42 = por %p40, %p41
      %p43 = scmp.ne.s32.totalorder %s32, %s35
      %p44 = scmp.eq.s32.totalorder %s27, 1
      %p45 = por %p43, %p44
      %p46 = scmp.ne.s32.totalorder %s35, %s36
      %p47 = scmp.eq.s32.totalorder %s27, 0
      %p48 = por %p46, %p47
      %p49 = scmp.ne.s32.totalorder %s35, %s36
      %p50 = scmp.eq.s32.totalorder %s28, 1
      %p51 = por %p49, %p50
      %p53 = scmp.ne.s32.totalorder %s36, %s52
      %p54 = scmp.eq.s32.totalorder %s28, 0
      %p55 = por %p53, %p54
      %s57 = sadd.s32 %s56, 1
      %p60 = scmp.eq.s32.totalorder %s22, 1
      %p61 = scmp.ne.s32.totalorder %s56, %s58
      %p62 = scmp.eq.s32.totalorder %s22, 0
      %p63 = por %p61, %p62
      %p64 = scmp.ne.s32.totalorder %s56, %s58
      %p65 = scmp.eq.s32.totalorder %s27, 1
      %p66 = por %p64, %p65
      %p67 = scmp.ne.s32.totalorder %s58, %s59
      %p68 = scmp.eq.s32.totalorder %s27, 0
      %p69 = por %p67, %p68
      %p70 = scmp.ne.s32.totalorder %s58, %s59
      %p71 = scmp.eq.s32.totalorder %s28, 1
      %p72 = por %p70, %p71
      %p74 = scmp.ne.s32.totalorder %s59, %s73
      %p75 = scmp.eq.s32.totalorder %s28, 0
      %p76 = por %p74, %p75
      %s77 = ssub.s32 %s22, %s29
      %p78 = scmp.eq.s32.totalorder %s77, 0
      %s80 = sadd.s32 %s79, 1
      %s81 = scalar_select %p78, %s79, %s80
      %p84 = pneg %p78
      %p85 = scmp.eq.s32.totalorder %s22, 1
      %p86 = por %p84, %p85
      %p87 = scmp.ne.s32.totalorder %s79, %s82
      %p88 = scmp.eq.s32.totalorder %s22, 0
      %p89 = por %p87, %p88
      %p90 = scmp.ne.s32.totalorder %s79, %s82
      %p91 = scmp.eq.s32.totalorder %s27, 1
      %p92 = por %p90, %p91
      %p93 = scmp.ne.s32.totalorder %s82, %s83
      %p94 = scmp.eq.s32.totalorder %s27, 0
      %p95 = por %p93, %p94
      %p96 = scmp.ne.s32.totalorder %s82, %s83
      %p97 = scmp.eq.s32.totalorder %s28, 1
      %p98 = por %p96, %p97
      %p100 = scmp.ne.s32.totalorder %s83, %s99
      %p101 = scmp.eq.s32.totalorder %s28, 0
      %p102 = por %p100, %p101
      %p103 = scmp.le.s32.totalorder 1, %s22
      %p104 = scmp.lt.s32.totalorder %s22, 3
      %p105 = pnand %p103, %p104
      %p106 = pneg %p105
      // Predicated region
      $region9: #{tuple_func_forward_batched.1} parent=5 // pred_check
        _
      $region10: #{tuple_func_forward_batched.1} parent=5 // pred_check_branch
        %108 = sbr.rel (%p105) target = $region12
      $region11: #{tuple_func_forward_batched.1} parent=5 // pred_region
        %s109 = ssub.s32 %s22, 1
        // Predicated region
        $region13: #{tuple_func_forward_batched.1} parent=11 // pred_check
          %p110 = pneg %p69
        $region14: #{tuple_func_forward_batched.1} parent=11 // pred_check_branch
          %112 = sbr.rel (%p110) target = $region16
        $region15: #{tuple_func_forward_batched.1} parent=11 // pred_region
          %s114 = ssub.s32 768, 768
          %115 = vsyncadd [#allocation8], %s114
          %s116 = sshll.u32 [#allocation7], 4
          %s117 = int_to_ptr.vmem [resolvable:$true] %s116
          %122 = dma.hbm_to_vmem [thread:$0]  %s2, 768, %s117, [#allocation8], 64, 64, 4
        $region16: #{tuple_func_forward_batched.1} parent=11 // pred_fallthru
          _
      $region12: #{tuple_func_forward_batched.1} parent=5 // pred_fallthru
        _
      %p123 = scmp.lt.s32.totalorder %s22, 2
      // Predicated region
      $region17: #{tuple_func_forward_batched.1} parent=5 // pred_check
        %p124 = pneg %p123
      $region18: #{tuple_func_forward_batched.1} parent=5 // pred_check_branch
        %126 = sbr.rel (%p124) target = $region20
      $region19: #{tuple_func_forward_batched.1} parent=5 // pred_region
        // Predicated region
        $region21: #{tuple_func_forward_batched.1} parent=19 // pred_check
          %p127 = pneg %p42
        $region22: #{tuple_func_forward_batched.1} parent=19 // pred_check_branch
          %129 = sbr.rel (%p127) target = $region24
        $region23: #{tuple_func_forward_batched.1} parent=19 // pred_region
          %s130 = sand.u32 %s32, 1
          %s131 = scalar_lea.sflag [#allocation5], %s130
          %s132 = sand.u32 %s32, 1
          %s133 = smul.addr %s132, 8
          %s134 = scalar_lea.vmem [#allocation4], %s133
          %s136 = ssub.s32 128, 128
          %137 = vsyncadd %s131, %s136
          %s138 = smul.addr %s22, 128
          %s139 = scalar_lea.hbm %s1, %s138
          %s141 = sshll.u32 %s134, 4
          %s142 = int_to_ptr.vmem [resolvable:$true] %s141
          %144 = dma.hbm_to_vmem [thread:$0]  %s139, 128, %s142, %s131
        $region24: #{tuple_func_forward_batched.1} parent=19 // pred_fallthru
          _
      $region20: #{tuple_func_forward_batched.1} parent=5 // pred_fallthru
        _
      %p145 = scmp.le.s32.totalorder 1, %s22
      %p146 = scmp.lt.s32.totalorder %s22, 3
      %p147 = pnand %p145, %p146
      %p148 = pneg %p147
      // Predicated region
      $region25: #{tuple_func_forward_batched.1} parent=5 // pred_check
        _
      $region26: #{tuple_func_forward_batched.1} parent=5 // pred_check_branch
        %150 = sbr.rel (%p147) target = $region28
      $region27: #{tuple_func_forward_batched.1} parent=5 // pred_region
        %s151 = ssub.s32 %s22, 1
        %s152 = sand.u32 %s35, 1
        %s153 = scalar_lea.sflag [#allocation5], %s152
        %s154 = sand.u32 %s35, 1
        %s155 = smul.addr %s154, 8
        %s156 = scalar_lea.vmem [#allocation4], %s155
        // Predicated region
        $region29: #{tuple_func_forward_batched.1} parent=27 // pred_check
          %p157 = pneg %p48
        $region30: #{tuple_func_forward_batched.1} parent=27 // pred_check_branch
          %159 = sbr.rel (%p157) target = $region32
        $region31: #{tuple_func_forward_batched.1} parent=27 // pred_region
          %160 = dma.done %s153, 128
        $region32: #{tuple_func_forward_batched.1} parent=27 // pred_fallthru
          _
        // Predicated region
        $region33: #{tuple_func_forward_batched.1} parent=27 // pred_check
          %p161 = pneg %p69
        $region34: #{tuple_func_forward_batched.1} parent=27 // pred_check_branch
          %163 = sbr.rel (%p161) target = $region36
        $region35: #{tuple_func_forward_batched.1} parent=27 // pred_region
          %164 = dma.done [#allocation8], 768
        $region36: #{tuple_func_forward_batched.1} parent=27 // pred_fallthru
          _
        %s165 = sand.u32 %s35, 1
        %s166 = scalar_lea.sflag [#allocation5], %s165
        %s167 = sand.u32 %s35, 1
        %s168 = smul.addr %s167, 8
        %s169 = scalar_lea.vmem [#allocation4], %s168
        %p170 = pneg %p48
        %p171 = pneg %p45
        %p172 = pneg %p69
        %p173 = pneg %p66
        %p174 = pneg %p95
        %p175 = pneg %p92
        %s176 = sand.u32 %s82, 1
        %s177 = scalar_lea.sflag [#allocation6], %s176
        %s178 = sand.u32 %s82, 1
        %s179 = smul.addr %s178, 8
        %s180 = scalar_lea.vmem [#allocation9], %s179
        %s182 = sld [smem:[#allocation3]]
        %s183 = sld [smem:[#allocation3 + $0x1]]
        %v184 = vld [vmem:[%s156] sm:$0xff]
        %v185 = vpack.c.bf16 %v184, %v184
        %v186 = vld [vmem:[#allocation7] sm:$0xf]
        %v187 = vld [vmem:[#allocation7 + $0x4] sm:$0xf]
        %v188 = vld [vmem:[#allocation7 + $0x8] sm:$0xf]
        %v189 = vld [vmem:[#allocation7 + $0xc] sm:$0xf]
        %v190 = vld [vmem:[#allocation7 + $0x10] sm:$0xf]
        %v191 = vld [vmem:[#allocation7 + $0x14] sm:$0xf]
        %v192 = vld [vmem:[#allocation7 + $0x18] sm:$0xf]
        %v193 = vld [vmem:[#allocation7 + $0x1c] sm:$0xf]
        %v194 = vld [vmem:[#allocation7 + $0x20] sm:$0xf]
        %v195 = vld [vmem:[#allocation7 + $0x24] sm:$0xf]
        %v196 = vld [vmem:[#allocation7 + $0x28] sm:$0xf]
        %v197 = vld [vmem:[#allocation7 + $0x2c] sm:$0xf]
        %v210 = vunpack.c.l.b16 %v186
        %v211 = vunpack.c.l.b16 %v187
        %v212 = vunpack.c.l.b16 %v188
        %v213 = vunpack.c.l.b16 %v189
        %v214 = vunpack.c.l.b16 %v190
        %v215 = vunpack.c.l.b16 %v191
        %v216 = vunpack.c.l.b16 %v192
        %v217 = vunpack.c.l.b16 %v193
        %v218 = vunpack.c.l.b16 %v194
        %v219 = vunpack.c.l.b16 %v195
        %v220 = vunpack.c.l.b16 %v196
        %v221 = vunpack.c.l.b16 %v197
        %v222 = vpack.c.b16 %v211, %v210
        %v223 = vpack.c.b16 %v213, %v212
        %v224 = vpack.c.b16 %v215, %v214
        %v225 = vpack.c.b16 %v217, %v216
        %v226 = vpack.c.b16 %v219, %v218
        %v227 = vpack.c.b16 %v221, %v220
        %vm234 = vcmask 785408
        %v236 = vsel %vm234, %v185, 0
        %238 = vmatprep.subr.bf16.mxu0 0
        %239 = vmatpush1.bf16.msra.mxu0 0
        %240 = vmatprep.subr.bf16.mxu0 0
        %241 = vmatpush1.bf16.msra.mxu0 0
        %242 = vmatprep.subr.bf16.mxu0 0
        %243 = vmatpush1.bf16.msra.mxu0 %v227
        %244 = vmatprep.subr.bf16.mxu0 0
        %245 = vmatpush1.bf16.msra.mxu0 %v226
        %246 = vmatprep.subr.bf16.mxu0 0
        %247 = vmatpush1.bf16.msra.mxu0 %v225
        %248 = vmatprep.subr.bf16.mxu0 0
        %249 = vmatpush1.bf16.msra.mxu0 %v224
        %250 = vmatprep.subr.bf16.mxu0 0
        %251 = vmatpush1.bf16.msra.mxu0 %v223
        %252 = vmatprep.subr.bf16.mxu0 0
        %253 = vmatpush1.bf16.msra.mxu0 %v222
        %254 = vmatprep.subr.bf16.mxu0 0
        %255 = vmatpush2.bf16.msra.mxu0 0
        %256 = vmatprep.subr.bf16.mxu0 0
        %257 = vmatpush2.bf16.msra.mxu0 0
        %258 = vmatprep.subr.bf16.mxu0 0
        %259 = vmatpush2.bf16.msra.mxu0 0
        %260 = vmatprep.subr.bf16.mxu0 0
        %261 = vmatpush2.bf16.msra.mxu0 0
        %262 = vmatprep.subr.bf16.mxu0 0
        %263 = vmatpush2.bf16.msra.mxu0 0
        %264 = vmatprep.subr.bf16.mxu0 0
        %265 = vmatpush2.bf16.msra.mxu0 0
        %266 = vmatprep.subr.bf16.mxu0 0
        %267 = vmatpush2.bf16.msra.mxu0 0
        %268 = vmatprep.subr.bf16.mxu0 0
        %269 = vmatpush2.bf16.msra.mxu0 0
        %270 = vmatprep.mubr.bf16.mxu0 0
        %271 = vmatmul.mubr.bf16.gmra.mxu0 %v236
        %v272 = vpop.f32.mrf.mxu0
        %v273 = vadd.f32 0.0, %v272
        %v274 = vpop.f32.mrf.mxu0
        %v275 = vpop.f32.mrf.mxu0
        %v276 = vpop.f32.mrf.mxu0
        %277 = vdwg.mxu0
        %v278 = vlaneseq
        %v279 = vand.u32 %v278, 127
        %v280 = vstv %s182
        %v281 = vadd.f32 %v273, %v280
        %v282 = vtanh.pop %v281
        %v283 = vstv %s183
        %v284 = vmul.f32 %v283, %v184
        %v285 = vadd.f32 %v284, %v273
        %vm286 = vcmp.lt.s32.totalorder %v279, 64
        %v287 = vsel %vm286, %v282, %v285
        %288 = vst.msk [vmem:[%s180] sm:$0xff] %vm234, %v287
        %s289 = sand.u32 %s82, 1
        %s290 = scalar_lea.sflag [#allocation6], %s289
        %s291 = sand.u32 %s82, 1
        %s292 = smul.addr %s291, 8
        %s293 = scalar_lea.vmem [#allocation9], %s292
        // Predicated region
        $region37: #{tuple_func_forward_batched.1} parent=27 // pred_check
          %p294 = pneg %p92
        $region38: #{tuple_func_forward_batched.1} parent=27 // pred_check_branch
          %296 = sbr.rel (%p294) target = $region40
        $region39: #{tuple_func_forward_batched.1} parent=27 // pred_region
          %s298 = ssub.s32 128, 128
          %299 = vsyncadd %s290, %s298
          %s300 = smul.addr %s27, 128
          %s301 = scalar_lea.hbm %s3, %s300
          %s303 = sshll.u32 %s293, 4
          %s304 = int_to_ptr.vmem [resolvable:$true] %s303
          %306 = dma.vmem_to_hbm [thread:$0]  %s304, 128, %s301, %s290
        $region40: #{tuple_func_forward_batched.1} parent=27 // pred_fallthru
          _
      $region28: #{tuple_func_forward_batched.1} parent=5 // pred_fallthru
        _
      %p307 = scmp.le.s32.totalorder 2, %s22
      // Predicated region
      $region41: #{tuple_func_forward_batched.1} parent=5 // pred_check
        %p308 = pneg %p307
      $region42: #{tuple_func_forward_batched.1} parent=5 // pred_check_branch
        %310 = sbr.rel (%p308) target = $region44
      $region43: #{tuple_func_forward_batched.1} parent=5 // pred_region
        %s311 = ssub.s32 %s22, 2
        // Predicated region
        $region45: #{tuple_func_forward_batched.1} parent=43 // pred_check
          %p312 = pneg %p98
        $region46: #{tuple_func_forward_batched.1} parent=43 // pred_check_branch
          %314 = sbr.rel (%p312) target = $region48
        $region47: #{tuple_func_forward_batched.1} parent=43 // pred_region
          %s315 = sand.u32 %s83, 1
          %s316 = scalar_lea.sflag [#allocation6], %s315
          %s317 = sand.u32 %s83, 1
          %s318 = smul.addr %s317, 8
          %s319 = scalar_lea.vmem [#allocation9], %s318
          %320 = dma.done %s316, 128
        $region48: #{tuple_func_forward_batched.1} parent=43 // pred_fallthru
          _
      $region44: #{tuple_func_forward_batched.1} parent=5 // pred_fallthru
        _
    $region6: #{tuple_func_forward_batched.1} parent=1 // loop_footer
      %s26 = sadd.s32 1, %s22
    $region7: #{tuple_func_forward_batched.1} parent=1 // loop_footer_branch
      %21 = sbr.rel target = $region3
    $region8: #{tuple_func_forward_batched.1} parent=1 // loop_exit
      _
    %321 = vsyncpa [#allocation5], 1
    %s322 = scalar_lea.sflag [#allocation5], 1
    %323 = vsyncpa %s322, 1
    %324 = vsyncpa [#allocation8], 1
    %325 = vsyncpa [#allocation6], 1
    %s326 = scalar_lea.sflag [#allocation6], 1
    %327 = vsyncpa %s326, 1

</llo_original>
